<compile_context>
chip_gen: v7x
topology: tpu7x:2x2x1
jax: 0.10.0
libtpu: 0.0.40
codegen_flags: <defaults>
</compile_context>

<pallas_src>
import jax
import jax.numpy as jnp
from jax import lax
from jax.experimental import pallas as pl
from jax.experimental.pallas import tpu as pltpu


_LANE = 128
_SUBLANE = 8
_MAX_TK = 2048  # lane-chunk width when the spatial axis must be tiled


def _round_up(v: int, m: int) -> int:
    return -(-v // m) * m


def _cdiv(a: int, b: int) -> int:
    return -(-a // b)


def _generation_params():
    """(target input-tile bytes, vmem_limit_bytes) per TPU generation."""
    kind = ""
    try:
        kind = jax.devices()[0].device_kind.lower()
    except Exception:
        pass
    if "v7" in kind:                      # 64 MiB VMEM per TC, 2 TCs
        return 8 * 1024 * 1024, 40 * 1024 * 1024
    if "v5" in kind or "v6" in kind:      # 128 MiB VMEM, single TC
        return 12 * 1024 * 1024, 64 * 1024 * 1024
    return 8 * 1024 * 1024, 40 * 1024 * 1024  # unknown: conservative


def _make_single_pass_kernel(inv_hw: float):
    # Whole spatial extent fits in one block: reduce, relu, sigmoid, store.
    def kernel(x_ref, o_ref):
        x = x_ref[...].astype(jnp.float32)                  # (tm, hw)
        s = jnp.sum(x, axis=-1, keepdims=True)              # (tm, 1)
        relu = jnp.maximum(s * inv_hw, 0.0)
        # avgout and "maxout" are the same tensor in the reference.
        o_ref[...] = jax.nn.sigmoid(2.0 * relu).astype(o_ref.dtype)

    return kernel


def _make_chunked_kernel(hw: int, tk: int, nj: int, inv_hw: float):
    # Spatial axis tiled across an "arbitrary" grid axis; VMEM accumulator.
    needs_mask = (hw % tk) != 0

    def kernel(x_ref, o_ref, acc_ref):
        j = pl.program_id(1)

        @pl.when(j == 0)
        def _():
            acc_ref[...] = jnp.zeros_like(acc_ref)

        x = x_ref[...].astype(jnp.float32)                  # (tm, tk)
        if needs_mask:
            # Out-of-bounds lanes of the trailing spatial chunk are garbage:
            # zero them before summing.
            col = lax.broadcasted_iota(jnp.int32, x.shape, 1) + j * tk
            x = jnp.where(col < hw, x, 0.0)
        acc_ref[...] += jnp.sum(x, axis=-1, keepdims=True)

        @pl.when(j == nj - 1)
        def _():
            relu = jnp.maximum(acc_ref[...] * inv_hw, 0.0)
            o_ref[...] = jax.nn.sigmoid(2.0 * relu).astype(o_ref.dtype)

    return kernel


def channel_attention_module(x: jax.Array, *, target_tile_bytes=None,
                             vmem_limit_bytes=None) -> jax.Array:
    """x: (N, C, H, W) -> (N, C, 1, 1), same dtype as x."""
    n, c, h, w = x.shape
    nc, hw = n * c, h * w

    tgt, vmem_limit = _generation_params()
    if target_tile_bytes is not None:
        tgt = target_tile_bytes
    if vmem_limit_bytes is not None:
        vmem_limit = vmem_limit_bytes

    itemsize = jnp.dtype(x.dtype).itemsize
    # Sublane multiple: 8 for 32-bit, 16 for bf16, 32 for int8/fp8 inputs.
    sub = max(_SUBLANE, 32 // itemsize)
    inv_hw = float(1.0 / hw)

    # ---- spatial (lane) tiling ----
    if hw * itemsize * sub <= tgt:
        tk, nj = hw, 1          # full-dim block: exempt from the /128 rule
    else:
        tk = min(_MAX_TK, max(_LANE, (tgt // (sub * itemsize)) // _LANE * _LANE))
        nj = _cdiv(hw, tk)

    # ---- row (N*C) tiling ----
    row_bytes = tk * itemsize
    tm = max(sub, (tgt // row_bytes) // sub * sub)
    if nc >= 2 * sub:
        # Guarantee >= 2 row blocks so the "parallel" axis spans both v7x TCs.
        tm = min(tm, _round_up(_cdiv(nc, 2), sub))
    tm = min(tm, _round_up(nc, sub))
    if tm >= nc:
        tm = nc                 # full-dim block: exempt from the /8 rule
    ni = _cdiv(nc, tm)

    x2d = x.reshape(nc, hw)     # free view; no pad, no dtype copy
    out_shape = jax.ShapeDtypeStruct((nc, 1), x.dtype)
    cost = pl.CostEstimate(
        flops=nc * hw + 4 * nc,
        transcendentals=nc,
        bytes_accessed=nc * hw * itemsize + nc * itemsize,
    )

    if nj == 1:
        out2d = pl.pallas_call(
            _make_single_pass_kernel(inv_hw),
            out_shape=out_shape,
            grid_spec=pltpu.PrefetchScalarGridSpec(
                num_scalar_prefetch=0,
                grid=(ni,),
                in_specs=[pl.BlockSpec((tm, tk), lambda i: (i, 0))],
                out_specs=pl.BlockSpec((tm, 1), lambda i: (i, 0)),
            ),
            compiler_params=pltpu.CompilerParams(
                dimension_semantics=("parallel",),
                vmem_limit_bytes=vmem_limit,
            ),
            cost_estimate=cost,
        )(x2d)
    else:
        out2d = pl.pallas_call(
            _make_chunked_kernel(hw, tk, nj, inv_hw),
            out_shape=out_shape,
            grid_spec=pltpu.PrefetchScalarGridSpec(
                num_scalar_prefetch=0,
                grid=(ni, nj),
                in_specs=[pl.BlockSpec((tm, tk), lambda i, j: (i, j))],
                out_specs=pl.BlockSpec((tm, 1), lambda i, j: (i, 0)),
                scratch_shapes=[pltpu.VMEM((tm, 1), jnp.float32)],
            ),
            compiler_params=pltpu.CompilerParams(
                dimension_semantics=("parallel", "arbitrary"),
                vmem_limit_bytes=vmem_limit,
            ),
            cost_estimate=cost,
        )(x2d)

    return out2d.reshape(n, c, 1, 1)


if __name__ == "__main__":
    key = jax.random.PRNGKey(0)

    def ref_fn(xx):
        # Pure-JAX reference mirroring the PyTorch forward exactly.
        avg = jnp.mean(xx.astype(jnp.float32), axis=(2, 3), keepdims=True)
        r = jnp.maximum(avg, 0.0)
        return jax.nn.sigmoid(r + r).astype(xx.dtype)

    k1, k2 = jax.random.split(key)

    # Primary small test: aligned shapes, single-pass (full-width) path.
    x1 = jax.random.normal(k1, (2, 4, 16, 16), dtype=jnp.float32)
    out1 = jax.block_until_ready(channel_attention_module(x1))
    assert out1.shape == (2, 4, 1, 1)
    assert jnp.allclose(out1, ref_fn(x1), atol=1e-5, rtol=1e-5), float(
        jnp.max(jnp.abs(out1 - ref_fn(x1))))

    # Unaligned shapes with a tiny forced tile budget: exercises the chunked
    # (P3 accumulator) path, the tail-lane mask, and partial trailing blocks.
    x2 = jax.random.normal(k2, (2, 21, 5, 50), dtype=jnp.float32)
    out2 = jax.block_until_ready(
        channel_attention_module(x2, target_tile_bytes=4096))
    assert out2.shape == (2, 21, 1, 1)
    assert jnp.allclose(out2, ref_fn(x2), atol=1e-5, rtol=1e-5), float(
        jnp.max(jnp.abs(out2 - ref_fn(x2))))

    print("KERNEL_OK")
</pallas_src>

<mosaic_0001>
module attributes {stable_mosaic.version = 11 : i64} {
  func.func @kernel(%arg0: i32, %arg1: memref<8x256xf32, #tpu.memory_space<vmem>>, %arg2: memref<8x1xf32, #tpu.memory_space<vmem>>) attributes {dimension_semantics = [#tpu.dimension_semantics<parallel>], iteration_bounds = array<i64: 1>, scalar_prefetch = 0 : i64, scratch_operands = 0 : i64, tpu.core_type = #tpu.core_type<tc>, window_params = [{transform_indices = @transform_0, window_bounds = array<i64: 8, 256>}, {transform_indices = @transform_1, window_bounds = array<i64: 8, 1>}]} {
    %c0 = arith.constant 0 : index
    %c0_0 = arith.constant 0 : index
    %0 = vector.load %arg1[%c0, %c0_0] : memref<8x256xf32, #tpu.memory_space<vmem>>, vector<8x256xf32>
    %cst = arith.constant dense<0.000000e+00> : vector<8xf32>
    %1 = vector.multi_reduction <add>, %0, %cst [1] : vector<8x256xf32> to vector<8xf32>
    %2 = vector.shape_cast %1 : vector<8xf32> to vector<8x1xf32>
    %cst_1 = arith.constant 3.906250e-03 : f32
    %3 = vector.broadcast %cst_1 : f32 to vector<8x1xf32>
    %4 = arith.mulf %2, %3 : vector<8x1xf32>
    %cst_2 = arith.constant 0.000000e+00 : f32
    %5 = vector.broadcast %cst_2 : f32 to vector<8x1xf32>
    %6 = arith.maximumf %4, %5 : vector<8x1xf32>
    %cst_3 = arith.constant 2.000000e+00 : f32
    %7 = vector.broadcast %cst_3 : f32 to vector<8x1xf32>
    %8 = arith.mulf %7, %6 : vector<8x1xf32>
    %9 = arith.negf %8 : vector<8x1xf32>
    %10 = math.exp %9 : vector<8x1xf32>
    %cst_4 = arith.constant 1.000000e+00 : f32
    %11 = vector.broadcast %cst_4 : f32 to vector<8x1xf32>
    %12 = arith.addf %11, %10 : vector<8x1xf32>
    %13 = arith.divf %11, %12 : vector<8x1xf32>
    %c0_5 = arith.constant 0 : index
    %c0_6 = arith.constant 0 : index
    %14 = vector.load %arg2[%c0_5, %c0_6] : memref<8x1xf32, #tpu.memory_space<vmem>>, vector<8x1xf32>
    tpu.vector_store %arg2[%c0_5, %c0_6], %13 {strides = array<i32>} : memref<8x1xf32, #tpu.memory_space<vmem>>, vector<8x1xf32>,
    return
  }
  func.func @transform_0(%arg0: i32) -> (i32, i32) {
    %c0_i32 = arith.constant 0 : i32
    %c0_i32_0 = arith.constant 0 : i32
    return %arg0, %c0_i32 : i32, i32
  }
  func.func @transform_1(%arg0: i32) -> (i32, i32) {
    %c0_i32 = arith.constant 0 : i32
    %c0_i32_0 = arith.constant 0 : i32
    return %arg0, %c0_i32 : i32, i32
  }
}

</mosaic_0001>

<llo_original>
// kernel: tpu_custom_call.1
$region0: #{tpu_custom_call.1}
  #allocation0 [shape = 'u32[]', space=smem, size = 0x4, offset = 0x4, fixed_abs, tag = 'smem constant byte address 0x4 - core index']
  #allocation1 [shape = 'u32[144,128]{1,0:T(1,128)}', space=vmem, size = 0x12000, scoped, tag = 'internal scratch']
  %s0 = inlined_call_operand.hbm [shape: f32[8,256], index: 0, kind: input, shape index: {}]
  %s1 = inlined_call_operand.vmem [shape: f32[8,1], index: 1, kind: output, shape index: {}]
  %s2 = sld [smem:[#allocation0]]
  $region18: #{tpu_custom_call.1} parent=0
    _
  %s4 = ssub.s32 1, %s2
  %s5 = scalar_select 0, %s4, %s2
  $region1: #{tpu_custom_call.1} parent=0
    #allocation2 [shape = 'u8[8192]{0}', space=vmem, size = 0x2000, scoped, tag = 'input window, operand 0, single buffered']
    #allocation3 [shape = 's32[1]{0}', space=sflag, size = 0x4, scoped, tag = 'scoped memory for tpu_custom_call.1']
    %6 = vsyncpa [#allocation3], 0
    // Predicated region
    $region2: #{tpu_custom_call.1} parent=1 // pred_check
      _
    $region3: #{tpu_custom_call.1} parent=1 // pred_check_branch
      %8 = sbr.rel (0) target = $region5
    $region4: #{tpu_custom_call.1} parent=1 // pred_region
      %s10 = ssub.s32 256, 256
      %11 = vsyncadd [#allocation3], %s10
      %s13 = sshll.u32 [#allocation2], 4
      %s14 = int_to_ptr.vmem [resolvable:$true] %s13
      %16 = dma.hbm_to_vmem [thread:$0]  %s0, 256, %s14, [#allocation3]
    $region5: #{tpu_custom_call.1} parent=1 // pred_fallthru
      _
    // Predicated region
    $region6: #{tpu_custom_call.1} parent=1 // pred_check
      _
    $region7: #{tpu_custom_call.1} parent=1 // pred_check_branch
      %18 = sbr.rel (0) target = $region9
    $region8: #{tpu_custom_call.1} parent=1 // pred_region
      %19 = dma.done [#allocation3], 256
    $region9: #{tpu_custom_call.1} parent=1 // pred_fallthru
      _
    %v20 = vld [vmem:[#allocation2] sm:$0xff]
    %v21 = vld [vmem:[#allocation2 + $0x8] sm:$0xff]
    %v22 = vadd.f32 %v20, %v21
    %23 = vadd.xlane.f32.xlu0 %v22
    %v24 = vpop.xlane.xlu0 %23
    %v25 = vmul.f32 %v24, 0.00390625
    %v26 = vmax.f32 %v25, 0.0
    %v27 = vmul.f32 %v26, 2.0
    %v28 = vxor.u32 %v27, 2147483648
    %v29 = vmul.f32 %v28, 1.442695
    %v30 = vpow.pop %v29
    %v31 = vadd.f32 %v30, 1.0
    %v32 = vrcp.pop %v31
    %v33 = vmul.f32 1.0, %v32
    %vm34 = vcmask 7168
    %35 = vst.msk [vmem:[%s1] sm:$0xff] %vm34, %v33
    // Predicated region
    $region10: #{tpu_custom_call.1} parent=1 // pred_check
      _
    $region11: #{tpu_custom_call.1} parent=1 // pred_check_branch
      %37 = sbr.rel (0) target = $region13
    $region12: #{tpu_custom_call.1} parent=1 // pred_region
      _
    $region13: #{tpu_custom_call.1} parent=1 // pred_fallthru
      _
    // Predicated region
    $region14: #{tpu_custom_call.1} parent=1 // pred_check
      _
    $region15: #{tpu_custom_call.1} parent=1 // pred_check_branch
      %39 = sbr.rel (0) target = $region17
    $region16: #{tpu_custom_call.1} parent=1 // pred_region
      _
    $region17: #{tpu_custom_call.1} parent=1 // pred_fallthru
      _
    %40 = vsyncpa [#allocation3], 1

</llo_original>
